<compile_context>
chip_gen: v7x
topology: tpu7x:2x2x1
jax: 0.10.0
libtpu: 0.0.40
codegen_flags: <defaults>
</compile_context>

<pallas_src>
import jax
import jax.numpy as jnp
from jax import lax
from jax.experimental import pallas as pl
from jax.experimental.pallas import tpu as pltpu


def _round_up(a, b):
    return (a + b - 1) // b * b


def _cdiv(a, b):
    return (a + b - 1) // b


def gap_block(x_nchw, weight, bias, *, batch_tile=128, x_tile_bytes=None):
    """GAPBlock forward: mean over (H, W) then Linear.

    x_nchw : (N, C, H, W)
    weight : (K, C)   -- PyTorch nn.Linear convention (out_features, in_features)
    bias   : (K,)
    returns: (N, K)
    """
    N, C, H, W = x_nchw.shape
    K, Cw = weight.shape
    assert Cw == C, "weight in_features must match channel count"
    L = H * W

    x_dtype = x_nchw.dtype
    itemsize = jnp.dtype(x_dtype).itemsize
    w_itemsize = jnp.dtype(weight.dtype).itemsize

    # ---- free, contiguous reshape: NCHW -> (N, C, L). No extra HBM passes. ----
    x_ncl = x_nchw.reshape(N, C, L)

    # ---- lane-dense K for weight / bias / output (tiny arrays, pad is cheap) ----
    Kp = _round_up(K, 128)
    w_pad = jnp.zeros((Kp, C), dtype=weight.dtype).at[:K, :].set(weight)
    b_pad = jnp.zeros((1, Kp), dtype=bias.dtype).at[0, :K].set(bias)

    # ---- per-generation VMEM budget ------------------------------------------
    try:
        info = pltpu.get_tpu_info()
        vmem_cap = int(getattr(info, "vmem_capacity_bytes", 64 << 20))
    except Exception:  # no TPU info available at trace time
        vmem_cap = 64 << 20  # conservative (v7x-sized) fallback
    vmem_budget = min(vmem_cap // 2, 64 << 20)

    # Real VMEM footprint accounts for (sublane, lane) tiling of the last two dims.
    sublane_x = 8 * max(1, 4 // itemsize)        # 8 (f32) / 16 (bf16) / 32 (int8)
    c_rows = _round_up(C, sublane_x)
    sublane_w = 8 * max(1, 4 // w_itemsize)
    w_vmem = Kp * _round_up(C, sublane_w) * w_itemsize
    b_vmem = 8 * Kp * w_itemsize

    if x_tile_bytes is None:
        # Budget for ONE x buffer (the stream is double-buffered), after reserving
        # room for weight/bias (counted twice in case Buffered(1) is unavailable)
        # plus slack for output tiles / accumulator / compiler scratch.
        x_tile_bytes = max(2 << 20, (vmem_budget - 2 * (w_vmem + b_vmem) - (4 << 20)) // 2)

    # ---- batch tile: never pad N; keep output stores sublane-aligned ---------
    lane_min = 128                                       # min lane extent of an x tile
    per_row_min = c_rows * lane_min * itemsize           # VMEM of one batch row, 128 lanes
    tn_cap = max(8, (x_tile_bytes // per_row_min) // 8 * 8)
    TN = min(batch_tile, tn_cap)
    if N <= TN:
        TN = N                                           # full-dim block: legal, zero waste
        grid_n = 1
    else:
        grid_n = _cdiv(N, TN)
    # v7x has 2 TensorCores: make sure the parallel batch axis has >= 2 blocks
    # whenever the batch can be split on sublane-aligned boundaries.
    if grid_n == 1 and N >= 16:
        TN = _round_up(_cdiv(N, 2), 8)
        grid_n = _cdiv(N, TN)

    # ---- spatial chunking: single full-L chunk if it fits, else 128-lane chunks
    # sized to minimize padding waste, with an in-kernel mask for the ragged tail.
    bytes_per_128_lanes = TN * c_rows * 128 * itemsize
    max_lane_chunks = max(1, x_tile_bytes // bytes_per_128_lanes)
    tl_max = max_lane_chunks * 128
    if L <= tl_max:
        TL = L                                           # full-dim block (no mask needed)
        grid_l = 1
        ragged_l = False
    else:
        n_chunks = _cdiv(L, tl_max)
        TL = _round_up(_cdiv(L, n_chunks), 128)          # lane-aligned, minimal overshoot
        grid_l = _cdiv(L, TL)
        ragged_l = (L % TL) != 0

    # ---- explicit scoped-VMEM limit so double buffering survives on every gen --
    x_block_vmem = TN * c_rows * _round_up(TL, 128) * itemsize
    acc_vmem = _round_up(TN, 8) * _round_up(C, 128) * 4
    out_vmem = 2 * _round_up(TN, 8) * Kp * itemsize
    est_vmem = 2 * x_block_vmem + 2 * (w_vmem + b_vmem) + acc_vmem + out_vmem + (2 << 20)
    vmem_limit = int(min(max(vmem_cap - (4 << 20), 16 << 20), max(est_vmem, 32 << 20)))

    # ---- advisory cost hint (bandwidth-bound op) ------------------------------
    cost = pl.CostEstimate(
        flops=2 * N * C * K + N * C * L,
        transcendentals=0,
        bytes_accessed=N * C * L * itemsize + Kp * C * w_itemsize
        + Kp * w_itemsize + N * Kp * itemsize,
    )

    inv_l = 1.0 / float(L)

    def kernel(x_ref, w_ref, b_ref, o_ref, acc_ref):
        # x_ref : (TN, C, TL)  raw NCHW activation chunk (C sublanes, spatial lanes)
        # w_ref : (Kp, C)      Linear weight, K padded to Kp (VMEM-resident)
        # b_ref : (1, Kp)      bias, K padded to Kp (VMEM-resident)
        # o_ref : (TN, Kp)     output tile (resident across the reduction axis)
        # acc_ref: (TN, C) f32 running spatial sum
        l = pl.program_id(1)

        @pl.when(l == 0)
        def _init():
            acc_ref[...] = jnp.zeros_like(acc_ref)

        xb = x_ref[...]
        if ragged_l:
            # Mask lanes past the true spatial extent (only the last chunk is
            # ragged; the extra where on full chunks is free VPU filler).
            lane = lax.broadcasted_iota(jnp.int32, (1, 1, TL), 2) + l * TL
            xb = jnp.where(lane < L, xb, jnp.zeros_like(xb))

        # Partial spatial sum over the lane axis; f32 accumulation regardless of
        # the input dtype. Result (TN, C) already has C on lanes for the MXU.
        acc_ref[...] += jnp.sum(xb, axis=-1, dtype=jnp.float32)

        @pl.when(l == pl.num_programs(1) - 1)
        def _finalize():
            # Apply the exact 1/(H*W) mean scale in f32, then feed the MXU in the
            # weight's native dtype (bf16 weights use the native bf16 path).
            pooled = (acc_ref[...] * inv_l).astype(w_ref.dtype)      # (TN, C)
            out = lax.dot_general(                                   # (TN, Kp)
                pooled, w_ref[...],
                dimension_numbers=(((1,), (1,)), ((), ())),          # contract C vs C
                preferred_element_type=jnp.float32)
            o_ref[...] = (out + b_ref[...].astype(jnp.float32)).astype(o_ref.dtype)

    def run(single_buffer_params):
        if single_buffer_params:
            # Constant index_map + Buffered(1): one VMEM copy of the weight/bias,
            # never re-fetched — frees VMEM for bigger activation blocks.
            w_spec = pl.BlockSpec((Kp, C), lambda n, l: (0, 0),
                                  pipeline_mode=pl.Buffered(1))
            b_spec = pl.BlockSpec((1, Kp), lambda n, l: (0, 0),
                                  pipeline_mode=pl.Buffered(1))
        else:
            w_spec = pl.BlockSpec((Kp, C), lambda n, l: (0, 0))
            b_spec = pl.BlockSpec((1, Kp), lambda n, l: (0, 0))

        return pl.pallas_call(
            kernel,
            out_shape=jax.ShapeDtypeStruct((N, Kp), x_dtype),
            grid=(grid_n, grid_l),                 # (parallel batch, trailing reduction)
            in_specs=[
                pl.BlockSpec((TN, C, TL), lambda n, l: (n, 0, l)),
                w_spec,
                b_spec,
            ],
            out_specs=pl.BlockSpec((TN, Kp), lambda n, l: (n, 0)),
            scratch_shapes=[pltpu.VMEM((TN, C), jnp.float32)],
            compiler_params=pltpu.CompilerParams(
                dimension_semantics=("parallel", "arbitrary"),
                vmem_limit_bytes=vmem_limit),
            cost_estimate=cost,
        )(x_ncl, w_pad, b_pad)

    try:
        out_padded = jax.block_until_ready(run(True))
    except Exception:
        # pipeline_mode=pl.Buffered(1) unsupported on this jax build: fall back
        # to default buffering of the (still VMEM-resident) weight/bias.
        out_padded = run(False)

    return out_padded[:, :K]


if __name__ == "__main__":
    # Small shapes consistent with the module: batch=2, in_features(C)=4,
    # spatial 16x16, num_classes=8.
    N, C, H, W = 2, 4, 16, 16
    num_classes = 8

    key = jax.random.PRNGKey(0)
    kx, kw, kb = jax.random.split(key, 3)

    x = jax.random.normal(kx, (N, C, H, W), dtype=jnp.float32)

    # Deterministic Linear init (uniform in [-1/sqrt(C), 1/sqrt(C)], like PyTorch).
    bound = 1.0 / (C ** 0.5)
    weight = jax.random.uniform(kw, (num_classes, C), dtype=jnp.float32,
                                minval=-bound, maxval=bound)
    bias = jax.random.uniform(kb, (num_classes,), dtype=jnp.float32,
                              minval=-bound, maxval=bound)

    out = gap_block(x, weight, bias)
    out = jax.block_until_ready(out)

    # Pure-JAX reference for sanity.
    ref = jnp.mean(x, axis=(2, 3)) @ weight.T + bias
    assert out.shape == (N, num_classes)
    assert jnp.allclose(out, ref, atol=1e-5, rtol=1e-5)

    print("KERNEL_OK")
</pallas_src>

<mosaic_0001>
module attributes {stable_mosaic.version = 11 : i64} {
  func.func @kernel(%arg0: i32, %arg1: i32, %arg2: memref<2x4x256xf32, #tpu.memory_space<vmem>>, %arg3: memref<128x4xf32, #tpu.memory_space<vmem>>, %arg4: memref<1x128xf32, #tpu.memory_space<vmem>>, %arg5: memref<2x128xf32, #tpu.memory_space<vmem>>, %arg6: memref<2x4xf32, #tpu.memory_space<vmem>>) attributes {dimension_semantics = [#tpu.dimension_semantics<parallel>, #tpu.dimension_semantics<arbitrary>], iteration_bounds = array<i64: 1, 1>, scalar_prefetch = 0 : i64, scratch_operands = 1 : i64, tpu.core_type = #tpu.core_type<tc>, window_params = [{transform_indices = @transform_0, window_bounds = array<i64: 2, 4, 256>}, {pipeline_mode = #tpu.pipeline_mode<synchronous>, transform_indices = @transform_1, window_bounds = array<i64: 128, 4>}, {pipeline_mode = #tpu.pipeline_mode<synchronous>, transform_indices = @transform_2, window_bounds = array<i64: 1, 128>}, {transform_indices = @transform_3, window_bounds = array<i64: 2, 128>}]} {
    %c0_i32 = arith.constant 0 : i32
    %0 = arith.cmpi eq, %arg1, %c0_i32 : i32
    %1 = arith.extui %0 : i1 to i32
    %c0_i32_0 = arith.constant 0 : i32
    %2 = arith.cmpi ne, %1, %c0_i32_0 : i32
    scf.if %2 {
      %cst_9 = arith.constant 0.000000e+00 : f32
      %11 = vector.broadcast %cst_9 : f32 to vector<2x4xf32>
      %c0_10 = arith.constant 0 : index
      %c0_11 = arith.constant 0 : index
      %12 = vector.load %arg6[%c0_10, %c0_11] : memref<2x4xf32, #tpu.memory_space<vmem>>, vector<2x4xf32>
      tpu.vector_store %arg6[%c0_10, %c0_11], %11 {strides = array<i32>} : memref<2x4xf32, #tpu.memory_space<vmem>>, vector<2x4xf32>,
    } else {
    }
    %c0 = arith.constant 0 : index
    %c0_1 = arith.constant 0 : index
    %c0_2 = arith.constant 0 : index
    %3 = vector.load %arg2[%c0, %c0_1, %c0_2] : memref<2x4x256xf32, #tpu.memory_space<vmem>>, vector<2x4x256xf32>
    %c0_3 = arith.constant 0 : index
    %c0_4 = arith.constant 0 : index
    %4 = vector.load %arg6[%c0_3, %c0_4] : memref<2x4xf32, #tpu.memory_space<vmem>>, vector<2x4xf32>
    %cst = arith.constant dense<0.000000e+00> : vector<2x4xf32>
    %5 = vector.multi_reduction <add>, %3, %cst [2] : vector<2x4x256xf32> to vector<2x4xf32>
    %6 = arith.addf %4, %5 : vector<2x4xf32>
    %c0_5 = arith.constant 0 : index
    %c0_6 = arith.constant 0 : index
    %7 = vector.load %arg6[%c0_5, %c0_6] : memref<2x4xf32, #tpu.memory_space<vmem>>, vector<2x4xf32>
    tpu.vector_store %arg6[%c0_5, %c0_6], %6 {strides = array<i32>} : memref<2x4xf32, #tpu.memory_space<vmem>>, vector<2x4xf32>,
    %c0_i32_7 = arith.constant 0 : i32
    %8 = arith.cmpi eq, %arg1, %c0_i32_7 : i32
    %9 = arith.extui %8 : i1 to i32
    %c0_i32_8 = arith.constant 0 : i32
    %10 = arith.cmpi ne, %9, %c0_i32_8 : i32
    scf.if %10 {
      %c0_9 = arith.constant 0 : index
      %c0_10 = arith.constant 0 : index
      %11 = vector.load %arg6[%c0_9, %c0_10] : memref<2x4xf32, #tpu.memory_space<vmem>>, vector<2x4xf32>
      %cst_11 = arith.constant 3.906250e-03 : f32
      %12 = vector.broadcast %cst_11 : f32 to vector<2x4xf32>
      %13 = arith.mulf %11, %12 : vector<2x4xf32>
      %c0_12 = arith.constant 0 : index
      %c0_13 = arith.constant 0 : index
      %14 = vector.load %arg3[%c0_12, %c0_13] : memref<128x4xf32, #tpu.memory_space<vmem>>, vector<128x4xf32>
      %cst_14 = arith.constant dense<0.000000e+00> : vector<2x128xf32>
      %15 = tpu.matmul %13, %14, %cst_14 {dimension_numbers = #tpu.dot_dimension_numbers<[1], [1], [0], [0], [0, 0, 1, 0], [], []>} : vector<2x4xf32>, vector<128x4xf32>, vector<2x128xf32> -> vector<2x128xf32>
      %c0_15 = arith.constant 0 : index
      %c0_16 = arith.constant 0 : index
      %16 = vector.load %arg4[%c0_15, %c0_16] : memref<1x128xf32, #tpu.memory_space<vmem>>, vector<1x128xf32>
      %17 = vector.broadcast %16 : vector<1x128xf32> to vector<2x128xf32>
      %18 = arith.addf %15, %17 : vector<2x128xf32>
      %c0_17 = arith.constant 0 : index
      %c0_18 = arith.constant 0 : index
      %19 = vector.load %arg5[%c0_17, %c0_18] : memref<2x128xf32, #tpu.memory_space<vmem>>, vector<2x128xf32>
      tpu.vector_store %arg5[%c0_17, %c0_18], %18 {strides = array<i32>} : memref<2x128xf32, #tpu.memory_space<vmem>>, vector<2x128xf32>,
    } else {
    }
    return
  }
  func.func @transform_0(%arg0: i32, %arg1: i32) -> (i32, i32, i32) {
    %c0_i32 = arith.constant 0 : i32
    %c0_i32_0 = arith.constant 0 : i32
    return %arg0, %c0_i32, %arg1 : i32, i32, i32
  }
  func.func @transform_1(%arg0: i32, %arg1: i32) -> (i32, i32) {
    %c0_i32 = arith.constant 0 : i32
    %c0_i32_0 = arith.constant 0 : i32
    %c0_i32_1 = arith.constant 0 : i32
    return %c0_i32, %c0_i32_0 : i32, i32
  }
  func.func @transform_2(%arg0: i32, %arg1: i32) -> (i32, i32) {
    %c0_i32 = arith.constant 0 : i32
    %c0_i32_0 = arith.constant 0 : i32
    %c0_i32_1 = arith.constant 0 : i32
    return %c0_i32, %c0_i32_0 : i32, i32
  }
  func.func @transform_3(%arg0: i32, %arg1: i32) -> (i32, i32) {
    %c0_i32 = arith.constant 0 : i32
    %c0_i32_0 = arith.constant 0 : i32
    return %arg0, %c0_i32 : i32, i32
  }
}

module attributes {stable_mosaic.version = 11 : i64} {
  func.func @kernel(%arg0: i32, %arg1: i32, %arg2: memref<2x4x256xf32, #tpu.memory_space<vmem>>, %arg3: memref<128x4xf32, #tpu.memory_space<vmem>>, %arg4: memref<1x128xf32, #tpu.memory_space<vmem>>, %arg5: memref<2x128xf32, #tpu.memory_space<vmem>>, %arg6: memref<2x4xf32, #tpu.memory_space<vmem>>) attributes {dimension_semantics = [#tpu.dimension_semantics<parallel>, #tpu.dimension_semantics<arbitrary>], iteration_bounds = array<i64: 1, 1>, scalar_prefetch = 0 : i64, scratch_operands = 1 : i64, tpu.core_type = #tpu.core_type<tc>, window_params = [{transform_indices = @transform_0, window_bounds = array<i64: 2, 4, 256>}, {pipeline_mode = #tpu.pipeline_mode<synchronous>, transform_indices = @transform_1, window_bounds = array<i64: 128, 4>}, {pipeline_mode = #tpu.pipeline_mode<synchronous>, transform_indices = @transform_2, window_bounds = array<i64: 1, 128>}, {transform_indices = @transform_3, window_bounds = array<i64: 2, 128>}]} {
    %c0_i32 = arith.constant 0 : i32
    %0 = arith.cmpi eq, %arg1, %c0_i32 : i32
    %1 = arith.extui %0 : i1 to i32
    %c0_i32_0 = arith.constant 0 : i32
    %2 = arith.cmpi ne, %1, %c0_i32_0 : i32
    scf.if %2 {
      %cst_9 = arith.constant 0.000000e+00 : f32
      %11 = vector.broadcast %cst_9 : f32 to vector<2x4xf32>
      %c0_10 = arith.constant 0 : index
      %c0_11 = arith.constant 0 : index
      %12 = vector.load %arg6[%c0_10, %c0_11] : memref<2x4xf32, #tpu.memory_space<vmem>>, vector<2x4xf32>
      tpu.vector_store %arg6[%c0_10, %c0_11], %11 {strides = array<i32>} : memref<2x4xf32, #tpu.memory_space<vmem>>, vector<2x4xf32>,
    } else {
    }
    %c0 = arith.constant 0 : index
    %c0_1 = arith.constant 0 : index
    %c0_2 = arith.constant 0 : index
    %3 = vector.load %arg2[%c0, %c0_1, %c0_2] : memref<2x4x256xf32, #tpu.memory_space<vmem>>, vector<2x4x256xf32>
    %c0_3 = arith.constant 0 : index
    %c0_4 = arith.constant 0 : index
    %4 = vector.load %arg6[%c0_3, %c0_4] : memref<2x4xf32, #tpu.memory_space<vmem>>, vector<2x4xf32>
    %cst = arith.constant dense<0.000000e+00> : vector<2x4xf32>
    %5 = vector.multi_reduction <add>, %3, %cst [2] : vector<2x4x256xf32> to vector<2x4xf32>
    %6 = arith.addf %4, %5 : vector<2x4xf32>
    %c0_5 = arith.constant 0 : index
    %c0_6 = arith.constant 0 : index
    %7 = vector.load %arg6[%c0_5, %c0_6] : memref<2x4xf32, #tpu.memory_space<vmem>>, vector<2x4xf32>
    tpu.vector_store %arg6[%c0_5, %c0_6], %6 {strides = array<i32>} : memref<2x4xf32, #tpu.memory_space<vmem>>, vector<2x4xf32>,
    %c0_i32_7 = arith.constant 0 : i32
    %8 = arith.cmpi eq, %arg1, %c0_i32_7 : i32
    %9 = arith.extui %8 : i1 to i32
    %c0_i32_8 = arith.constant 0 : i32
    %10 = arith.cmpi ne, %9, %c0_i32_8 : i32
    scf.if %10 {
      %c0_9 = arith.constant 0 : index
      %c0_10 = arith.constant 0 : index
      %11 = vector.load %arg6[%c0_9, %c0_10] : memref<2x4xf32, #tpu.memory_space<vmem>>, vector<2x4xf32>
      %cst_11 = arith.constant 3.906250e-03 : f32
      %12 = vector.broadcast %cst_11 : f32 to vector<2x4xf32>
      %13 = arith.mulf %11, %12 : vector<2x4xf32>
      %c0_12 = arith.constant 0 : index
      %c0_13 = arith.constant 0 : index
      %14 = vector.load %arg3[%c0_12, %c0_13] : memref<128x4xf32, #tpu.memory_space<vmem>>, vector<128x4xf32>
      %cst_14 = arith.constant dense<0.000000e+00> : vector<2x128xf32>
      %15 = tpu.matmul %13, %14, %cst_14 {dimension_numbers = #tpu.dot_dimension_numbers<[1], [1], [0], [0], [0, 0, 1, 0], [], []>} : vector<2x4xf32>, vector<128x4xf32>, vector<2x128xf32> -> vector<2x128xf32>
      %c0_15 = arith.constant 0 : index
      %c0_16 = arith.constant 0 : index
      %16 = vector.load %arg4[%c0_15, %c0_16] : memref<1x128xf32, #tpu.memory_space<vmem>>, vector<1x128xf32>
      %17 = vector.broadcast %16 : vector<1x128xf32> to vector<2x128xf32>
      %18 = arith.addf %15, %17 : vector<2x128xf32>
      %c0_17 = arith.constant 0 : index
      %c0_18 = arith.constant 0 : index
      %19 = vector.load %arg5[%c0_17, %c0_18] : memref<2x128xf32, #tpu.memory_space<vmem>>, vector<2x128xf32>
      tpu.vector_store %arg5[%c0_17, %c0_18], %18 {strides = array<i32>} : memref<2x128xf32, #tpu.memory_space<vmem>>, vector<2x128xf32>,
    } else {
    }
    return
  }
  func.func @transform_0(%arg0: i32, %arg1: i32) -> (i32, i32, i32) {
    %c0_i32 = arith.constant 0 : i32
    %c0_i32_0 = arith.constant 0 : i32
    return %arg0, %c0_i32, %arg1 : i32, i32, i32
  }
  func.func @transform_1(%arg0: i32, %arg1: i32) -> (i32, i32) {
    %c0_i32 = arith.constant 0 : i32
    %c0_i32_0 = arith.constant 0 : i32
    %c0_i32_1 = arith.constant 0 : i32
    return %c0_i32, %c0_i32_0 : i32, i32
  }
  func.func @transform_2(%arg0: i32, %arg1: i32) -> (i32, i32) {
    %c0_i32 = arith.constant 0 : i32
    %c0_i32_0 = arith.constant 0 : i32
    %c0_i32_1 = arith.constant 0 : i32
    return %c0_i32, %c0_i32_0 : i32, i32
  }
  func.func @transform_3(%arg0: i32, %arg1: i32) -> (i32, i32) {
    %c0_i32 = arith.constant 0 : i32
    %c0_i32_0 = arith.constant 0 : i32
    return %arg0, %c0_i32 : i32, i32
  }
}

</mosaic_0001>

<llo_original>
// kernel: tpu_custom_call.1
$region0: #{tpu_custom_call.1}
  #allocation0 [shape = 'u32[]', space=smem, size = 0x4, offset = 0x4, fixed_abs, tag = 'smem constant byte address 0x4 - core index']
  #allocation1 [shape = 'u32[144,128]{1,0:T(1,128)}', space=vmem, size = 0x12000, scoped, tag = 'internal scratch']
  #allocation2 [shape = 'f32[2,4]{1,0:T(2,128)}', space=vmem, size = 0x400, scoped, tag = 'scratch operand']
  %s0 = inlined_call_operand.vmem [shape: f32[2,4,256], index: 0, kind: input, shape index: {}]
  %s1 = inlined_call_operand.vmem [shape: f32[128,4], index: 1, kind: input, shape index: {}]
  %s2 = inlined_call_operand.vmem [shape: f32[1,128], index: 2, kind: input, shape index: {}]
  %s3 = inlined_call_operand.hbm [shape: f32[2,128], index: 3, kind: output, shape index: {}]
  %s4 = sld [smem:[#allocation0]]
  $region30: #{tpu_custom_call.1} parent=0
    _
  %s6 = ssub.s32 1, %s4
  %s7 = scalar_select 0, %s6, %s4
  $region1: #{tpu_custom_call.1} parent=0
    #allocation3 [shape = 'u8[1024]{0}', space=vmem, size = 0x400, scoped, tag = 'output window, operand 0, single buffered']
    #allocation4 [shape = 's32[1]{0}', space=sflag, size = 0x4, scoped, tag = 'scoped memory for tpu_custom_call.1']
    %8 = vsyncpa [#allocation4], 0
    // Predicated region
    $region2: #{tpu_custom_call.1} parent=1 // pred_check
      _
    $region3: #{tpu_custom_call.1} parent=1 // pred_check_branch
      %10 = sbr.rel (0) target = $region5
    $region4: #{tpu_custom_call.1} parent=1 // pred_region
      _
    $region5: #{tpu_custom_call.1} parent=1 // pred_fallthru
      _
    // Predicated region
    $region6: #{tpu_custom_call.1} parent=1 // pred_check
      _
    $region7: #{tpu_custom_call.1} parent=1 // pred_check_branch
      %12 = sbr.rel (0) target = $region9
    $region8: #{tpu_custom_call.1} parent=1 // pred_region
      _
    $region9: #{tpu_custom_call.1} parent=1 // pred_fallthru
      _
    // Predicated region
    $region10: #{tpu_custom_call.1} parent=1 // pred_check
      _
    $region11: #{tpu_custom_call.1} parent=1 // pred_check_branch
      %14 = sbr.rel (0) target = $region13
    $region12: #{tpu_custom_call.1} parent=1 // pred_region
      _
    $region13: #{tpu_custom_call.1} parent=1 // pred_fallthru
      _
    %p15 = scmp.eq.s32.totalorder 0, 0
    // Predicated region
    $region14: #{tpu_custom_call.1} parent=1 // pred_check
      %p16 = pneg %p15
    $region15: #{tpu_custom_call.1} parent=1 // pred_check_branch
      %18 = sbr.rel (%p16) target = $region17
    $region16: #{tpu_custom_call.1} parent=1 // pred_region
      %vm19 = vcmask 25600
      %20 = vst.msk [vmem:[#allocation2] sm:$0x3] %vm19, 0.0
    $region17: #{tpu_custom_call.1} parent=1 // pred_fallthru
      _
    %v21 = vld [vmem:[%s0] sm:$0xff]
    %v22 = vld [vmem:[%s0 + $0x8] sm:$0xff]
    %v23 = vld [vmem:[#allocation2] sm:$0x3]
    %v26 = vcombine.high %v21, %v21
    %v27 = vcombine.high %v22, %v22
    %vm30 = vcmask 1043456
    %v31 = vsel %vm30, %v21, 0.0
    %v32 = vsel %vm30, %v26, 0.0
    %v33 = vadd.f32 %v31, %v32
    %34 = vadd.xlane.f32.xlu0 %v33
    %v35 = vpop.xlane.xlu0 %34
    %v36 = vsel %vm30, %v22, 0.0
    %v37 = vsel %vm30, %v27, 0.0
    %v38 = vadd.f32 %v36, %v37
    %39 = vadd.xlane.f32.xlu0 %v38
    %v40 = vpop.xlane.xlu0 %39
    %v43 = vlaneseq
    %v44 = vand.u32 %v43, 127
    %v45 = vlaneseq
    %v46 = vshrl.u32 %v45, 7
    %v47 = vsub.s32 %v44, %v46
    %v48 = vrot.slane %v35, %v47
    %v49 = vlaneseq
    %v50 = vshrl.u32 %v49, 7
    %v51 = vsub.s32 %v44, %v50
    %v52 = vrot.slane %v40, %v51
    %vm53 = vcmask 1041409
    %v54 = vsel %vm53, %v52, %v48
    %v56 = vadd.f32 %v23, %v54
    %vm57 = vcmask 25600
    %58 = vst.msk [vmem:[#allocation2] sm:$0x3] %vm57, %v56
    // Predicated region
    $region18: #{tpu_custom_call.1} parent=1 // pred_check
      %p59 = pneg %p15
    $region19: #{tpu_custom_call.1} parent=1 // pred_check_branch
      %61 = sbr.rel (%p59) target = $region21
    $region20: #{tpu_custom_call.1} parent=1 // pred_region
      %v62 = vld [vmem:[#allocation2] sm:$0x3]
      %v63 = vmul.f32 %v62, 0.00390625
      %v64 = vld [vmem:[%s1] sm:$0xff]
      %v65 = vld [vmem:[%s1 + $0x8] sm:$0xff]
      %v66 = vld [vmem:[%s1 + $0x10] sm:$0xff]
      %v67 = vld [vmem:[%s1 + $0x18] sm:$0xff]
      %v68 = vld [vmem:[%s1 + $0x20] sm:$0xff]
      %v69 = vld [vmem:[%s1 + $0x28] sm:$0xff]
      %v70 = vld [vmem:[%s1 + $0x30] sm:$0xff]
      %v71 = vld [vmem:[%s1 + $0x38] sm:$0xff]
      %v72 = vld [vmem:[%s1 + $0x40] sm:$0xff]
      %v73 = vld [vmem:[%s1 + $0x48] sm:$0xff]
      %v74 = vld [vmem:[%s1 + $0x50] sm:$0xff]
      %v75 = vld [vmem:[%s1 + $0x58] sm:$0xff]
      %v76 = vld [vmem:[%s1 + $0x60] sm:$0xff]
      %v77 = vld [vmem:[%s1 + $0x68] sm:$0xff]
      %v78 = vld [vmem:[%s1 + $0x70] sm:$0xff]
      %v79 = vld [vmem:[%s1 + $0x78] sm:$0xff]
      %v80 = vld [vmem:[%s2] sm:$0x1]
      %v82 = vlaneseq
      %v83 = vshrl.u32 %v82, 7
      %v84 = vsub.s32 0, %v83
      %v85 = vrot.slane %v80, %v84
      %vm87 = vcmask 31744
      %v89 = vsel %vm87, %v63, 0
      %v92 = vsel %vm87, %v64, 0
      %v95 = vsel %vm87, %v65, 0
      %v98 = vsel %vm87, %v66, 0
      %v101 = vsel %vm87, %v67, 0
      %v104 = vsel %vm87, %v68, 0
      %v107 = vsel %vm87, %v69, 0
      %v110 = vsel %vm87, %v70, 0
      %v113 = vsel %vm87, %v71, 0
      %v116 = vsel %vm87, %v72, 0
      %v119 = vsel %vm87, %v73, 0
      %v122 = vsel %vm87, %v74, 0
      %v125 = vsel %vm87, %v75, 0
      %v128 = vsel %vm87, %v76, 0
      %v131 = vsel %vm87, %v77, 0
      %v134 = vsel %vm87, %v78, 0
      %v137 = vsel %vm87, %v79, 0
      %139 = vmatprep.subr.mxu0 0.0
      %140 = vmatpush1.xpose.msra.mxu0 %v92
      %141 = vmatprep.subr.mxu0 0.0
      %142 = vmatpush1.xpose.msra.mxu0 %v95
      %143 = vmatprep.subr.mxu0 0.0
      %144 = vmatpush1.xpose.msra.mxu0 %v98
      %145 = vmatprep.subr.mxu0 0.0
      %146 = vmatpush1.xpose.msra.mxu0 %v101
      %147 = vmatprep.subr.mxu0 0.0
      %148 = vmatpush1.xpose.msra.mxu0 %v104
      %149 = vmatprep.subr.mxu0 0.0
      %150 = vmatpush1.xpose.msra.mxu0 %v107
      %151 = vmatprep.subr.mxu0 0.0
      %152 = vmatpush1.xpose.msra.mxu0 %v110
      %153 = vmatprep.subr.mxu0 0.0
      %154 = vmatpush1.xpose.msra.mxu0 %v113
      %155 = vmatprep.subr.mxu0 0.0
      %156 = vmatpush1.xpose.msra.mxu0 %v116
      %157 = vmatprep.subr.mxu0 0.0
      %158 = vmatpush1.xpose.msra.mxu0 %v119
      %159 = vmatprep.subr.mxu0 0.0
      %160 = vmatpush1.xpose.msra.mxu0 %v122
      %161 = vmatprep.subr.mxu0 0.0
      %162 = vmatpush1.xpose.msra.mxu0 %v125
      %163 = vmatprep.subr.mxu0 0.0
      %164 = vmatpush1.xpose.msra.mxu0 %v128
      %165 = vmatprep.subr.mxu0 0.0
      %166 = vmatpush1.xpose.msra.mxu0 %v131
      %167 = vmatprep.subr.mxu0 0.0
      %168 = vmatpush1.xpose.msra.mxu0 %v134
      %169 = vmatprep.subr.mxu0 0.0
      %170 = vmatpush1.xpose.msra.mxu0 %v137
      %171 = vmatprep.subr.mxu0 0.0
      %172 = vmatpush1.xpose.msra.mxu0 0.0
      %173 = vmatprep.subr.mxu0 0.0
      %174 = vmatpush1.xpose.msra.mxu0 0.0
      %175 = vmatprep.subr.mxu0 0.0
      %176 = vmatpush1.xpose.msra.mxu0 0.0
      %177 = vmatprep.subr.mxu0 0.0
      %178 = vmatpush1.xpose.msra.mxu0 0.0
      %179 = vmatprep.subr.mxu0 0.0
      %180 = vmatpush1.xpose.msra.mxu0 0.0
      %181 = vmatprep.subr.mxu0 0.0
      %182 = vmatpush1.xpose.msra.mxu0 0.0
      %183 = vmatprep.subr.mxu0 0.0
      %184 = vmatpush1.xpose.msra.mxu0 0.0
      %185 = vmatprep.subr.mxu0 0.0
      %186 = vmatpush1.xpose.msra.mxu0 0.0
      %187 = vmatprep.subr.mxu0 0.0
      %188 = vmatpush1.xpose.msra.mxu0 0.0
      %189 = vmatprep.subr.mxu0 0.0
      %190 = vmatpush1.xpose.msra.mxu0 0.0
      %191 = vmatprep.subr.mxu0 0.0
      %192 = vmatpush1.xpose.msra.mxu0 0.0
      %193 = vmatprep.subr.mxu0 0.0
      %194 = vmatpush1.xpose.msra.mxu0 0.0
      %195 = vmatprep.subr.mxu0 0.0
      %196 = vmatpush1.xpose.msra.mxu0 0.0
      %197 = vmatprep.subr.mxu0 0.0
      %198 = vmatpush1.xpose.msra.mxu0 0.0
      %199 = vmatprep.subr.mxu0 0.0
      %200 = vmatpush1.xpose.msra.mxu0 0.0
      %201 = vmatprep.subr.mxu0 0.0
      %202 = vmatpush1.xpose.msra.mxu0 0.0
      %203 = vmatprep.mubr.f32.mxu0 0.0
      %204 = vmatmul.mubr.f32.gmra.mrb[0].mxu0 %v89
      %v205 = vpop.f32.mrb[0].mxu0
      %v206 = vadd.f32 %v85, %v205
      %v207 = vpop.f32.mrb[0].mxu0
      %208 = vdwg.mxu0
      %209 = vst [vmem:[#allocation3] sm:$0x3] %v206
    $region21: #{tpu_custom_call.1} parent=1 // pred_fallthru
      _
    // Predicated region
    $region22: #{tpu_custom_call.1} parent=1 // pred_check
      _
    $region23: #{tpu_custom_call.1} parent=1 // pred_check_branch
      %211 = sbr.rel (0) target = $region25
    $region24: #{tpu_custom_call.1} parent=1 // pred_region
      %s213 = ssub.s32 32, 32
      %214 = vsyncadd [#allocation4], %s213
      %s216 = sshll.u32 [#allocation3], 4
      %s217 = int_to_ptr.vmem [resolvable:$true] %s216
      %219 = dma.vmem_to_hbm [thread:$0]  %s217, 32, %s3, [#allocation4]
    $region25: #{tpu_custom_call.1} parent=1 // pred_fallthru
      _
    // Predicated region
    $region26: #{tpu_custom_call.1} parent=1 // pred_check
      _
    $region27: #{tpu_custom_call.1} parent=1 // pred_check_branch
      %221 = sbr.rel (0) target = $region29
    $region28: #{tpu_custom_call.1} parent=1 // pred_region
      %222 = dma.done [#allocation4], 32
    $region29: #{tpu_custom_call.1} parent=1 // pred_fallthru
      _
    %223 = vsyncpa [#allocation4], 1

// kernel: tpu_custom_call.1
$region0: #{tpu_custom_call.1}
  #allocation0 [shape = 'u32[]', space=smem, size = 0x4, offset = 0x4, fixed_abs, tag = 'smem constant byte address 0x4 - core index']
  #allocation1 [shape = 'u32[144,128]{1,0:T(1,128)}', space=vmem, size = 0x12000, scoped, tag = 'internal scratch']
  #allocation2 [shape = 'f32[2,4]{1,0:T(2,128)}', space=vmem, size = 0x400, scoped, tag = 'scratch operand']
  %s0 = inlined_call_operand.vmem [shape: f32[2,4,256], index: 0, kind: input, shape index: {}]
  %s1 = inlined_call_operand.vmem [shape: f32[128,4], index: 1, kind: input, shape index: {}]
  %s2 = inlined_call_operand.vmem [shape: f32[1,128], index: 2, kind: input, shape index: {}]
  %s3 = inlined_call_operand.hbm [shape: f32[2,128], index: 3, kind: output, shape index: {}]
  %s4 = sld [smem:[#allocation0]]
  $region30: #{tpu_custom_call.1} parent=0
    _
  %s6 = ssub.s32 1, %s4
  %s7 = scalar_select 0, %s6, %s4
  $region1: #{tpu_custom_call.1} parent=0
    #allocation3 [shape = 'u8[1024]{0}', space=vmem, size = 0x400, scoped, tag = 'output window, operand 0, single buffered']
    #allocation4 [shape = 's32[1]{0}', space=sflag, size = 0x4, scoped, tag = 'scoped memory for tpu_custom_call.1']
    %8 = vsyncpa [#allocation4], 0
    // Predicated region
    $region2: #{tpu_custom_call.1} parent=1 // pred_check
      _
    $region3: #{tpu_custom_call.1} parent=1 // pred_check_branch
      %10 = sbr.rel (0) target = $region5
    $region4: #{tpu_custom_call.1} parent=1 // pred_region
      _
    $region5: #{tpu_custom_call.1} parent=1 // pred_fallthru
      _
    // Predicated region
    $region6: #{tpu_custom_call.1} parent=1 // pred_check
      _
    $region7: #{tpu_custom_call.1} parent=1 // pred_check_branch
      %12 = sbr.rel (0) target = $region9
    $region8: #{tpu_custom_call.1} parent=1 // pred_region
      _
    $region9: #{tpu_custom_call.1} parent=1 // pred_fallthru
      _
    // Predicated region
    $region10: #{tpu_custom_call.1} parent=1 // pred_check
      _
    $region11: #{tpu_custom_call.1} parent=1 // pred_check_branch
      %14 = sbr.rel (0) target = $region13
    $region12: #{tpu_custom_call.1} parent=1 // pred_region
      _
    $region13: #{tpu_custom_call.1} parent=1 // pred_fallthru
      _
    %p15 = scmp.eq.s32.totalorder 0, 0
    // Predicated region
    $region14: #{tpu_custom_call.1} parent=1 // pred_check
      %p16 = pneg %p15
    $region15: #{tpu_custom_call.1} parent=1 // pred_check_branch
      %18 = sbr.rel (%p16) target = $region17
    $region16: #{tpu_custom_call.1} parent=1 // pred_region
      %vm19 = vcmask 25600
      %20 = vst.msk [vmem:[#allocation2] sm:$0x3] %vm19, 0.0
    $region17: #{tpu_custom_call.1} parent=1 // pred_fallthru
      _
    %v21 = vld [vmem:[%s0] sm:$0xff]
    %v22 = vld [vmem:[%s0 + $0x8] sm:$0xff]
    %v23 = vld [vmem:[#allocation2] sm:$0x3]
    %v26 = vcombine.high %v21, %v21
    %v27 = vcombine.high %v22, %v22
    %vm30 = vcmask 1043456
    %v31 = vsel %vm30, %v21, 0.0
    %v32 = vsel %vm30, %v26, 0.0
    %v33 = vadd.f32 %v31, %v32
    %34 = vadd.xlane.f32.xlu0 %v33
    %v35 = vpop.xlane.xlu0 %34
    %v36 = vsel %vm30, %v22, 0.0
    %v37 = vsel %vm30, %v27, 0.0
    %v38 = vadd.f32 %v36, %v37
    %39 = vadd.xlane.f32.xlu0 %v38
    %v40 = vpop.xlane.xlu0 %39
    %v43 = vlaneseq
    %v44 = vand.u32 %v43, 127
    %v45 = vlaneseq
    %v46 = vshrl.u32 %v45, 7
    %v47 = vsub.s32 %v44, %v46
    %v48 = vrot.slane %v35, %v47
    %v49 = vlaneseq
    %v50 = vshrl.u32 %v49, 7
    %v51 = vsub.s32 %v44, %v50
    %v52 = vrot.slane %v40, %v51
    %vm53 = vcmask 1041409
    %v54 = vsel %vm53, %v52, %v48
    %v56 = vadd.f32 %v23, %v54
    %vm57 = vcmask 25600
    %58 = vst.msk [vmem:[#allocation2] sm:$0x3] %vm57, %v56
    // Predicated region
    $region18: #{tpu_custom_call.1} parent=1 // pred_check
      %p59 = pneg %p15
    $region19: #{tpu_custom_call.1} parent=1 // pred_check_branch
      %61 = sbr.rel (%p59) target = $region21
    $region20: #{tpu_custom_call.1} parent=1 // pred_region
      %v62 = vld [vmem:[#allocation2] sm:$0x3]
      %v63 = vmul.f32 %v62, 0.00390625
      %v64 = vld [vmem:[%s1] sm:$0xff]
      %v65 = vld [vmem:[%s1 + $0x8] sm:$0xff]
      %v66 = vld [vmem:[%s1 + $0x10] sm:$0xff]
      %v67 = vld [vmem:[%s1 + $0x18] sm:$0xff]
      %v68 = vld [vmem:[%s1 + $0x20] sm:$0xff]
      %v69 = vld [vmem:[%s1 + $0x28] sm:$0xff]
      %v70 = vld [vmem:[%s1 + $0x30] sm:$0xff]
      %v71 = vld [vmem:[%s1 + $0x38] sm:$0xff]
      %v72 = vld [vmem:[%s1 + $0x40] sm:$0xff]
      %v73 = vld [vmem:[%s1 + $0x48] sm:$0xff]
      %v74 = vld [vmem:[%s1 + $0x50] sm:$0xff]
      %v75 = vld [vmem:[%s1 + $0x58] sm:$0xff]
      %v76 = vld [vmem:[%s1 + $0x60] sm:$0xff]
      %v77 = vld [vmem:[%s1 + $0x68] sm:$0xff]
      %v78 = vld [vmem:[%s1 + $0x70] sm:$0xff]
      %v79 = vld [vmem:[%s1 + $0x78] sm:$0xff]
      %v80 = vld [vmem:[%s2] sm:$0x1]
      %v82 = vlaneseq
      %v83 = vshrl.u32 %v82, 7
      %v84 = vsub.s32 0, %v83
      %v85 = vrot.slane %v80, %v84
      %vm87 = vcmask 31744
      %v89 = vsel %vm87, %v63, 0
      %v92 = vsel %vm87, %v64, 0
      %v95 = vsel %vm87, %v65, 0
      %v98 = vsel %vm87, %v66, 0
      %v101 = vsel %vm87, %v67, 0
      %v104 = vsel %vm87, %v68, 0
      %v107 = vsel %vm87, %v69, 0
      %v110 = vsel %vm87, %v70, 0
      %v113 = vsel %vm87, %v71, 0
      %v116 = vsel %vm87, %v72, 0
      %v119 = vsel %vm87, %v73, 0
      %v122 = vsel %vm87, %v74, 0
      %v125 = vsel %vm87, %v75, 0
      %v128 = vsel %vm87, %v76, 0
      %v131 = vsel %vm87, %v77, 0
      %v134 = vsel %vm87, %v78, 0
      %v137 = vsel %vm87, %v79, 0
      %139 = vmatprep.subr.mxu0 0.0
      %140 = vmatpush1.xpose.msra.mxu0 %v92
      %141 = vmatprep.subr.mxu0 0.0
      %142 = vmatpush1.xpose.msra.mxu0 %v95
      %143 = vmatprep.subr.mxu0 0.0
      %144 = vmatpush1.xpose.msra.mxu0 %v98
      %145 = vmatprep.subr.mxu0 0.0
      %146 = vmatpush1.xpose.msra.mxu0 %v101
      %147 = vmatprep.subr.mxu0 0.0
      %148 = vmatpush1.xpose.msra.mxu0 %v104
      %149 = vmatprep.subr.mxu0 0.0
      %150 = vmatpush1.xpose.msra.mxu0 %v107
      %151 = vmatprep.subr.mxu0 0.0
      %152 = vmatpush1.xpose.msra.mxu0 %v110
      %153 = vmatprep.subr.mxu0 0.0
      %154 = vmatpush1.xpose.msra.mxu0 %v113
      %155 = vmatprep.subr.mxu0 0.0
      %156 = vmatpush1.xpose.msra.mxu0 %v116
      %157 = vmatprep.subr.mxu0 0.0
      %158 = vmatpush1.xpose.msra.mxu0 %v119
      %159 = vmatprep.subr.mxu0 0.0
      %160 = vmatpush1.xpose.msra.mxu0 %v122
      %161 = vmatprep.subr.mxu0 0.0
      %162 = vmatpush1.xpose.msra.mxu0 %v125
      %163 = vmatprep.subr.mxu0 0.0
      %164 = vmatpush1.xpose.msra.mxu0 %v128
      %165 = vmatprep.subr.mxu0 0.0
      %166 = vmatpush1.xpose.msra.mxu0 %v131
      %167 = vmatprep.subr.mxu0 0.0
      %168 = vmatpush1.xpose.msra.mxu0 %v134
      %169 = vmatprep.subr.mxu0 0.0
      %170 = vmatpush1.xpose.msra.mxu0 %v137
      %171 = vmatprep.subr.mxu0 0.0
      %172 = vmatpush1.xpose.msra.mxu0 0.0
      %173 = vmatprep.subr.mxu0 0.0
      %174 = vmatpush1.xpose.msra.mxu0 0.0
      %175 = vmatprep.subr.mxu0 0.0
      %176 = vmatpush1.xpose.msra.mxu0 0.0
      %177 = vmatprep.subr.mxu0 0.0
      %178 = vmatpush1.xpose.msra.mxu0 0.0
      %179 = vmatprep.subr.mxu0 0.0
      %180 = vmatpush1.xpose.msra.mxu0 0.0
      %181 = vmatprep.subr.mxu0 0.0
      %182 = vmatpush1.xpose.msra.mxu0 0.0
      %183 = vmatprep.subr.mxu0 0.0
      %184 = vmatpush1.xpose.msra.mxu0 0.0
      %185 = vmatprep.subr.mxu0 0.0
      %186 = vmatpush1.xpose.msra.mxu0 0.0
      %187 = vmatprep.subr.mxu0 0.0
      %188 = vmatpush1.xpose.msra.mxu0 0.0
      %189 = vmatprep.subr.mxu0 0.0
      %190 = vmatpush1.xpose.msra.mxu0 0.0
      %191 = vmatprep.subr.mxu0 0.0
      %192 = vmatpush1.xpose.msra.mxu0 0.0
      %193 = vmatprep.subr.mxu0 0.0
      %194 = vmatpush1.xpose.msra.mxu0 0.0
      %195 = vmatprep.subr.mxu0 0.0
      %196 = vmatpush1.xpose.msra.mxu0 0.0
      %197 = vmatprep.subr.mxu0 0.0
      %198 = vmatpush1.xpose.msra.mxu0 0.0
      %199 = vmatprep.subr.mxu0 0.0
      %200 = vmatpush1.xpose.msra.mxu0 0.0
      %201 = vmatprep.subr.mxu0 0.0
      %202 = vmatpush1.xpose.msra.mxu0 0.0
      %203 = vmatprep.mubr.f32.mxu0 0.0
      %204 = vmatmul.mubr.f32.gmra.mrb[0].mxu0 %v89
      %v205 = vpop.f32.mrb[0].mxu0
      %v206 = vadd.f32 %v85, %v205
      %v207 = vpop.f32.mrb[0].mxu0
      %208 = vdwg.mxu0
      %209 = vst [vmem:[#allocation3] sm:$0x3] %v206
    $region21: #{tpu_custom_call.1} parent=1 // pred_fallthru
      _
    // Predicated region
    $region22: #{tpu_custom_call.1} parent=1 // pred_check
      _
    $region23: #{tpu_custom_call.1} parent=1 // pred_check_branch
      %211 = sbr.rel (0) target = $region25
    $region24: #{tpu_custom_call.1} parent=1 // pred_region
      %s213 = ssub.s32 32, 32
      %214 = vsyncadd [#allocation4], %s213
      %s216 = sshll.u32 [#allocation3], 4
      %s217 = int_to_ptr.vmem [resolvable:$true] %s216
      %219 = dma.vmem_to_hbm [thread:$0]  %s217, 32, %s3, [#allocation4]
    $region25: #{tpu_custom_call.1} parent=1 // pred_fallthru
      _
    // Predicated region
    $region26: #{tpu_custom_call.1} parent=1 // pred_check
      _
    $region27: #{tpu_custom_call.1} parent=1 // pred_check_branch
      %221 = sbr.rel (0) target = $region29
    $region28: #{tpu_custom_call.1} parent=1 // pred_region
      %222 = dma.done [#allocation4], 32
    $region29: #{tpu_custom_call.1} parent=1 // pred_fallthru
      _
    %223 = vsyncpa [#allocation4], 1

</llo_original>
